<compile_context>
chip_gen: v5e
topology: v5e:2x2
jax: 0.10.0
libtpu: 0.0.40
codegen_flags: <defaults>
</compile_context>

<pallas_src>
import functools

import jax
import jax.numpy as jnp
from jax.experimental import pallas as pl
from jax.experimental.pallas import tpu as pltpu


# ---------------------------------------------------------------------------
# helpers
# ---------------------------------------------------------------------------
def _vmem_limit_bytes():
    """Per-generation scoped-VMEM limit: ~75% of physical, capped at 100 MiB."""
    cap = None
    try:
        cap = getattr(pltpu.get_tpu_info(), "vmem_capacity_bytes", None)
    except Exception:
        cap = None
    if not cap:
        cap = 64 * 1024 * 1024          # conservative default (v7x per-TC VMEM)
    return int(min(cap * 3 // 4, 100 * 1024 * 1024))


def _largest_dividing_multiple(n, base, cap):
    """Largest multiple of `base` dividing `n` (n % base == 0) that is <= cap."""
    best = base
    nb = n // base
    i = 1
    while i * i <= nb:
        if nb % i == 0:
            for d in (i, nb // i):
                t = d * base
                if best < t <= cap:
                    best = t
        i += 1
    return best


# ---------------------------------------------------------------------------
# Fused single-pass kernel: means -> tiny gate -> apply, one HBM read of f0/f1.
# ---------------------------------------------------------------------------
def _cab_fused_kernel(f0_ref, f1_ref, w0_ref, b0_ref, w1_ref, b1_ref, o_ref,
                      *, inv_s):
    f0 = f0_ref[...]                                        # (C, S), native dtype
    f1 = f1_ref[...]
    C = f0_ref.shape[0]

    # per-channel spatial means (f32 accumulation), kept as (C, 1) columns
    m0 = jnp.sum(f0.astype(jnp.float32), axis=-1, keepdims=True) * inv_s
    m1 = jnp.sum(f1.astype(jnp.float32), axis=-1, keepdims=True) * inv_s

    # Column-form FC stack: y = W @ x + b.  Split W0 over [m0; m1] to avoid a
    # concat:  W0 @ [m0;m1] = W0[:, :C] @ m0 + W0[:, C:] @ m1.
    h = (jnp.dot(w0_ref[:, :C], m0, preferred_element_type=jnp.float32)
         + jnp.dot(w0_ref[:, C:], m1, preferred_element_type=jnp.float32)
         + b0_ref[...])                                      # (2C, 1)
    h = jnp.where(h >= 0, h, jnp.float32(1e-5) * h)          # LeakyReLU(1e-5)
    g = jnp.dot(w1_ref[...], h, preferred_element_type=jnp.float32) + b1_ref[...]
    gate = jax.nn.sigmoid(g).astype(o_ref.dtype)             # (C, 1)

    o_ref[...] = f0 * gate + f1                              # lane-broadcast FMA


# ---------------------------------------------------------------------------
# Two-pass fallback, phase 1: tiled mean over the flattened spatial axis.
# Accumulates directly into the resident f32 output blocks (no scratch).
# ---------------------------------------------------------------------------
def _cab_reduce_kernel(f0_ref, f1_ref, m0_ref, m1_ref, *, inv_s):
    k = pl.program_id(1)

    @pl.when(k == 0)
    def _():
        m0_ref[...] = jnp.zeros_like(m0_ref)
        m1_ref[...] = jnp.zeros_like(m1_ref)

    m0_ref[...] += jnp.sum(f0_ref[...].astype(jnp.float32), axis=-1, keepdims=True)
    m1_ref[...] += jnp.sum(f1_ref[...].astype(jnp.float32), axis=-1, keepdims=True)

    @pl.when(k == pl.num_programs(1) - 1)
    def _():
        m0_ref[...] *= inv_s
        m1_ref[...] *= inv_s


# ---------------------------------------------------------------------------
# Two-pass fallback, phase 3: memory-bound elementwise apply in native dtype.
# ---------------------------------------------------------------------------
def _cab_apply_kernel(f0_ref, f1_ref, w_ref, o_ref):
    o_ref[...] = f0_ref[...] * w_ref[...] + f1_ref[...]      # w: (RT,1) broadcast


# ---------------------------------------------------------------------------
# Wrapper
# ---------------------------------------------------------------------------
def cab_forward(f0, f1, w0, b0, w1, b1, *, donate_f1=False, _force_two_pass=False):
    """f0, f1: (B, C, D, H, W) with identical shapes (required by the residual
    add in the reference module). Streams data in its native dtype."""
    assert f0.shape == f1.shape, "CAB residual add requires matching shapes"
    B, C = f0.shape[0], f0.shape[1]
    S = 1
    for d in f0.shape[2:]:
        S *= d
    BC = B * C
    C2 = 2 * C
    dtype = f0.dtype
    isz = jnp.dtype(dtype).itemsize
    inv_s = float(1.0 / S)

    vmem_limit = _vmem_limit_bytes()

    w0f = jnp.asarray(w0, jnp.float32)        # (2C, 2C)
    b0f = jnp.asarray(b0, jnp.float32)        # (2C,)
    w1f = jnp.asarray(w1, jnp.float32)        # (C, 2C)
    b1f = jnp.asarray(b1, jnp.float32)        # (C,)

    # ---------------- fused single-pass path -------------------------------
    # Per grid step: f0/f1/out strips, double-buffered (6 blocks) plus f32
    # temporaries for the mean accumulation when inputs are sub-f32.
    strip_bytes = C * S * isz
    fused_need = 6 * strip_bytes + 2 * C * S * 4 + 64 * 1024
    if (not _force_two_pass) and fused_need <= (vmem_limit * 7) // 10:
        f0_r = f0.reshape(B, C, S)
        f1_r = f1.reshape(B, C, S)
        strip_spec = pl.BlockSpec((None, C, S), lambda b: (b, 0, 0))
        cost = pl.CostEstimate(
            flops=3 * B * C * S + 2 * B * (C2 * C2 + C2 * C),
            transcendentals=B * C2,
            bytes_accessed=3 * B * C * S * isz + 4 * (C2 * C2 + C * C2 + C2 + C))
        out = pl.pallas_call(
            functools.partial(_cab_fused_kernel, inv_s=inv_s),
            out_shape=jax.ShapeDtypeStruct((B, C, S), dtype),
            grid=(B,),
            in_specs=[strip_spec, strip_spec,
                      pl.BlockSpec((C2, C2), lambda b: (0, 0)),
                      pl.BlockSpec((C2, 1), lambda b: (0, 0)),
                      pl.BlockSpec((C, C2), lambda b: (0, 0)),
                      pl.BlockSpec((C, 1), lambda b: (0, 0))],
            out_specs=strip_spec,
            compiler_params=pltpu.CompilerParams(
                dimension_semantics=("parallel",),
                vmem_limit_bytes=vmem_limit),
            cost_estimate=cost,
            # f1 is purely additive: write in place when the caller donates it.
            input_output_aliases=({1: 0} if donate_f1 else {}),
        )(f0_r, f1_r, w0f, b0f.reshape(C2, 1), w1f, b1f.reshape(C, 1))
        return out.reshape(f0.shape)

    # ---------------- two-pass fallback (large strips) ----------------------
    f0_flat = f0.reshape(BC, S)
    f1_flat = f1.reshape(BC, S)

    # Pad S to a lane multiple (zero pad is sum-neutral; sliced off after apply).
    S_pad = ((S + 127) // 128) * 128
    if S_pad != S:
        pad = S_pad - S
        f0_flat = jnp.pad(f0_flat, ((0, 0), (0, pad)))
        f1_flat = jnp.pad(f1_flat, ((0, 0), (0, pad)))

    # Row tile (boundary blocks are masked by Pallas; ops are per-row so safe).
    # NOTE: when BC <= 128 the row axis has a single step; on v7x phase 1 then
    # runs on one TensorCore — those shapes normally take the fused path.
    RT = min(BC, 128)
    grid_rows = pl.cdiv(BC, RT)

    # Lane tile sized by bytes (~4 MiB per block), multiple of 128, divides S_pad.
    block_target = 4 * 1024 * 1024
    ts_cap = max(128, (block_target // max(1, RT * isz)) // 128 * 128)
    ts_cap = min(ts_cap, S_pad)
    TS = _largest_dividing_multiple(S_pad, 128, ts_cap)
    grid_s = S_pad // TS

    # -- phase 1: per-row means over the spatial axis ------------------------
    reduce_cost = pl.CostEstimate(
        flops=2 * BC * S_pad,
        transcendentals=0,
        bytes_accessed=2 * BC * S_pad * isz + 2 * BC * 4)
    m0_col, m1_col = pl.pallas_call(
        functools.partial(_cab_reduce_kernel, inv_s=inv_s),
        out_shape=(jax.ShapeDtypeStruct((BC, 1), jnp.float32),
                   jax.ShapeDtypeStruct((BC, 1), jnp.float32)),
        grid=(grid_rows, grid_s),
        in_specs=[pl.BlockSpec((RT, TS), lambda i, k: (i, k)),
                  pl.BlockSpec((RT, TS), lambda i, k: (i, k))],
        out_specs=(pl.BlockSpec((RT, 1), lambda i, k: (i, 0)),
                   pl.BlockSpec((RT, 1), lambda i, k: (i, 0))),
        compiler_params=pltpu.CompilerParams(
            dimension_semantics=("parallel", "arbitrary"),
            vmem_limit_bytes=vmem_limit),
        cost_estimate=reduce_cost,
    )(f0_flat, f1_flat)

    # -- phase 2: tiny FC gate in plain JAX (no kernel dispatch) -------------
    m = jnp.concatenate([m0_col.reshape(B, C), m1_col.reshape(B, C)], axis=-1)
    h = m @ w0f.T + b0f
    h = jnp.where(h >= 0, h, jnp.float32(1e-5) * h)            # LeakyReLU(1e-5)
    g = jax.nn.sigmoid(h @ w1f.T + b1f)                        # (B, C)
    gate_rows = g.reshape(BC, 1).astype(dtype)

    # -- phase 3: apply  o = f0 * w + f1  ------------------------------------
    apply_cost = pl.CostEstimate(
        flops=2 * BC * S_pad,
        transcendentals=0,
        bytes_accessed=3 * BC * S_pad * isz + BC * isz)
    out_flat = pl.pallas_call(
        _cab_apply_kernel,
        out_shape=jax.ShapeDtypeStruct((BC, S_pad), dtype),
        grid=(grid_rows, grid_s),
        in_specs=[pl.BlockSpec((RT, TS), lambda i, k: (i, k)),
                  pl.BlockSpec((RT, TS), lambda i, k: (i, k)),
                  pl.BlockSpec((RT, 1), lambda i, k: (i, 0))],
        out_specs=pl.BlockSpec((RT, TS), lambda i, k: (i, k)),
        compiler_params=pltpu.CompilerParams(
            dimension_semantics=("parallel", "parallel"),
            vmem_limit_bytes=vmem_limit),
        cost_estimate=apply_cost,
        input_output_aliases=({1: 0} if (donate_f1 and S_pad == S) else {}),
    )(f0_flat, f1_flat, gate_rows)

    if S_pad != S:
        out_flat = out_flat[:, :S]
    return out_flat.reshape(f0.shape)


def cab_reference(f0, f1, w0, b0, w1, b1):
    """Pure-JAX reference mirroring the PyTorch forward exactly."""
    B = f0.shape[0]
    f = jnp.concatenate([f0, f1], axis=1)
    f = jnp.mean(f.reshape(B, f.shape[1], -1), axis=-1)
    f = f @ w0.T + b0
    f = jnp.where(f >= 0, f, 1e-5 * f)                         # LeakyReLU(1e-5)
    f = f @ w1.T + b1
    w = jax.nn.sigmoid(f)
    return f0 * w[:, :, None, None, None] + f1


if __name__ == "__main__":
    key = jax.random.PRNGKey(0)
    B, C, D, H, W = 2, 4, 8, 32, 32        # in_dims_0 = in_dims_1 = 4, S = 8192
    C2 = 2 * C

    k_f0, k_f1, k_w0, k_w1 = jax.random.split(key, 4)
    f0 = jax.random.normal(k_f0, (B, C, D, H, W), jnp.float32)
    f1 = jax.random.normal(k_f1, (B, C, D, H, W), jnp.float32)

    # Deterministic parameters matching the module's init_weights:
    # Linear weights ~ N(0, 0.01), biases zero.
    w0 = 0.01 * jax.random.normal(k_w0, (C2, C2), jnp.float32)   # fc_0.weight
    b0 = jnp.zeros((C2,), jnp.float32)                           # fc_0.bias
    w1 = 0.01 * jax.random.normal(k_w1, (C, C2), jnp.float32)    # fc_1.weight
    b1 = jnp.zeros((C,), jnp.float32)                            # fc_1.bias

    ref = cab_reference(f0, f1, w0, b0, w1, b1)

    # Fused single-pass path (used automatically for this shape).
    out = cab_forward(f0, f1, w0, b0, w1, b1)
    jax.block_until_ready(out)
    assert out.shape == (B, C, D, H, W)
    assert out.dtype == f0.dtype
    assert jnp.allclose(out, ref, atol=1e-5, rtol=1e-5), "fused path mismatch"

    # Two-pass fallback path (exercised explicitly to keep it verified).
    out2 = cab_forward(f0, f1, w0, b0, w1, b1, _force_two_pass=True)
    jax.block_until_ready(out2)
    assert jnp.allclose(out2, ref, atol=1e-5, rtol=1e-5), "two-pass path mismatch"

    print("KERNEL_OK")
</pallas_src>

<mosaic_0001>
module attributes {stable_mosaic.version = 11 : i64} {
  func.func @_cab_fused_kernel(%arg0: i32, %arg1: memref<1x4x8192xf32, #tpu.memory_space<vmem>>, %arg2: memref<1x4x8192xf32, #tpu.memory_space<vmem>>, %arg3: memref<8x8xf32, #tpu.memory_space<vmem>>, %arg4: memref<8x1xf32, #tpu.memory_space<vmem>>, %arg5: memref<4x8xf32, #tpu.memory_space<vmem>>, %arg6: memref<4x1xf32, #tpu.memory_space<vmem>>, %arg7: memref<1x4x8192xf32, #tpu.memory_space<vmem>>) attributes {dimension_semantics = [#tpu.dimension_semantics<parallel>], iteration_bounds = array<i64: 2>, scalar_prefetch = 0 : i64, scratch_operands = 0 : i64, tpu.core_type = #tpu.core_type<tc>, window_params = [{transform_indices = @transform_0, window_bounds = array<i64: 1, 4, 8192>}, {transform_indices = @transform_1, window_bounds = array<i64: 1, 4, 8192>}, {pipeline_mode = #tpu.pipeline_mode<synchronous>, transform_indices = @transform_2, window_bounds = array<i64: 8, 8>}, {pipeline_mode = #tpu.pipeline_mode<synchronous>, transform_indices = @transform_3, window_bounds = array<i64: 8, 1>}, {pipeline_mode = #tpu.pipeline_mode<synchronous>, transform_indices = @transform_4, window_bounds = array<i64: 4, 8>}, {pipeline_mode = #tpu.pipeline_mode<synchronous>, transform_indices = @transform_5, window_bounds = array<i64: 4, 1>}, {transform_indices = @transform_6, window_bounds = array<i64: 1, 4, 8192>}]} {
    %c0 = arith.constant 0 : index
    %c0_0 = arith.constant 0 : index
    %c0_1 = arith.constant 0 : index
    %0 = vector.load %arg1[%c0, %c0_0, %c0_1] : memref<1x4x8192xf32, #tpu.memory_space<vmem>>, vector<1x4x8192xf32>
    %1 = vector.shape_cast %0 : vector<1x4x8192xf32> to vector<4x8192xf32>
    %c0_2 = arith.constant 0 : index
    %c0_3 = arith.constant 0 : index
    %c0_4 = arith.constant 0 : index
    %2 = vector.load %arg2[%c0_2, %c0_3, %c0_4] : memref<1x4x8192xf32, #tpu.memory_space<vmem>>, vector<1x4x8192xf32>
    %3 = vector.shape_cast %2 : vector<1x4x8192xf32> to vector<4x8192xf32>
    %cst = arith.constant dense<0.000000e+00> : vector<4xf32>
    %4 = vector.multi_reduction <add>, %1, %cst [1] : vector<4x8192xf32> to vector<4xf32>
    %5 = vector.shape_cast %4 : vector<4xf32> to vector<4x1xf32>
    %cst_5 = arith.constant 1.22070313E-4 : f32
    %6 = vector.broadcast %cst_5 : f32 to vector<4x1xf32>
    %7 = arith.mulf %5, %6 : vector<4x1xf32>
    %cst_6 = arith.constant dense<0.000000e+00> : vector<4xf32>
    %8 = vector.multi_reduction <add>, %3, %cst_6 [1] : vector<4x8192xf32> to vector<4xf32>
    %9 = vector.shape_cast %8 : vector<4xf32> to vector<4x1xf32>
    %cst_7 = arith.constant 1.22070313E-4 : f32
    %10 = vector.broadcast %cst_7 : f32 to vector<4x1xf32>
    %11 = arith.mulf %9, %10 : vector<4x1xf32>
    %c0_8 = arith.constant 0 : index
    %c0_9 = arith.constant 0 : index
    %12 = vector.load %arg3[%c0_8, %c0_9] : memref<8x8xf32, #tpu.memory_space<vmem>>, vector<8x4xf32>
    %cst_10 = arith.constant dense<0.000000e+00> : vector<8x1xf32>
    %13 = tpu.matmul %12, %7, %cst_10 {dimension_numbers = #tpu.dot_dimension_numbers<[1], [0], [0], [1], [0, 0, 1, 1], [], []>} : vector<8x4xf32>, vector<4x1xf32>, vector<8x1xf32> -> vector<8x1xf32>
    %c0_11 = arith.constant 0 : index
    %c4 = arith.constant 4 : index
    %14 = vector.load %arg3[%c0_11, %c4] : memref<8x8xf32, #tpu.memory_space<vmem>>, vector<8x4xf32>
    %cst_12 = arith.constant dense<0.000000e+00> : vector<8x1xf32>
    %15 = tpu.matmul %14, %11, %cst_12 {dimension_numbers = #tpu.dot_dimension_numbers<[1], [0], [0], [1], [0, 0, 1, 1], [], []>} : vector<8x4xf32>, vector<4x1xf32>, vector<8x1xf32> -> vector<8x1xf32>
    %16 = arith.addf %13, %15 : vector<8x1xf32>
    %c0_13 = arith.constant 0 : index
    %c0_14 = arith.constant 0 : index
    %17 = vector.load %arg4[%c0_13, %c0_14] : memref<8x1xf32, #tpu.memory_space<vmem>>, vector<8x1xf32>
    %18 = arith.addf %16, %17 : vector<8x1xf32>
    %cst_15 = arith.constant 0.000000e+00 : f32
    %19 = vector.broadcast %cst_15 : f32 to vector<8x1xf32>
    %20 = arith.cmpf oge, %18, %19 : vector<8x1xf32>
    %cst_16 = arith.constant 9.99999974E-6 : f32
    %21 = vector.broadcast %cst_16 : f32 to vector<8x1xf32>
    %22 = arith.mulf %21, %18 : vector<8x1xf32>
    %23 = arith.select %20, %18, %22 : vector<8x1xi1>, vector<8x1xf32>
    %c0_17 = arith.constant 0 : index
    %c0_18 = arith.constant 0 : index
    %24 = vector.load %arg5[%c0_17, %c0_18] : memref<4x8xf32, #tpu.memory_space<vmem>>, vector<4x8xf32>
    %cst_19 = arith.constant dense<0.000000e+00> : vector<4x1xf32>
    %25 = tpu.matmul %24, %23, %cst_19 {dimension_numbers = #tpu.dot_dimension_numbers<[1], [0], [0], [1], [0, 0, 1, 1], [], []>} : vector<4x8xf32>, vector<8x1xf32>, vector<4x1xf32> -> vector<4x1xf32>
    %c0_20 = arith.constant 0 : index
    %c0_21 = arith.constant 0 : index
    %26 = vector.load %arg6[%c0_20, %c0_21] : memref<4x1xf32, #tpu.memory_space<vmem>>, vector<4x1xf32>
    %27 = arith.addf %25, %26 : vector<4x1xf32>
    %28 = arith.negf %27 : vector<4x1xf32>
    %29 = math.exp %28 : vector<4x1xf32>
    %cst_22 = arith.constant 1.000000e+00 : f32
    %30 = vector.broadcast %cst_22 : f32 to vector<4x1xf32>
    %31 = arith.addf %30, %29 : vector<4x1xf32>
    %32 = arith.divf %30, %31 : vector<4x1xf32>
    %33 = vector.broadcast %32 : vector<4x1xf32> to vector<4x8192xf32>
    %34 = arith.mulf %1, %33 : vector<4x8192xf32>
    %35 = arith.addf %34, %3 : vector<4x8192xf32>
    %c0_23 = arith.constant 0 : index
    %c0_24 = arith.constant 0 : index
    %c0_25 = arith.constant 0 : index
    %36 = vector.load %arg7[%c0_23, %c0_24, %c0_25] : memref<1x4x8192xf32, #tpu.memory_space<vmem>>, vector<1x4x8192xf32>
    %37 = vector.shape_cast %36 : vector<1x4x8192xf32> to vector<4x8192xf32>
    %38 = vector.shape_cast %35 : vector<4x8192xf32> to vector<1x4x8192xf32>
    tpu.vector_store %arg7[%c0_23, %c0_24, %c0_25], %38 {strides = array<i32>} : memref<1x4x8192xf32, #tpu.memory_space<vmem>>, vector<1x4x8192xf32>,
    return
  }
  func.func @transform_0(%arg0: i32) -> (i32, i32, i32) {
    %c0_i32 = arith.constant 0 : i32
    %c0_i32_0 = arith.constant 0 : i32
    %c0_i32_1 = arith.constant 0 : i32
    return %arg0, %c0_i32, %c0_i32_0 : i32, i32, i32
  }
  func.func @transform_1(%arg0: i32) -> (i32, i32, i32) {
    %c0_i32 = arith.constant 0 : i32
    %c0_i32_0 = arith.constant 0 : i32
    %c0_i32_1 = arith.constant 0 : i32
    return %arg0, %c0_i32, %c0_i32_0 : i32, i32, i32
  }
  func.func @transform_2(%arg0: i32) -> (i32, i32) {
    %c0_i32 = arith.constant 0 : i32
    %c0_i32_0 = arith.constant 0 : i32
    %c0_i32_1 = arith.constant 0 : i32
    return %c0_i32, %c0_i32_0 : i32, i32
  }
  func.func @transform_3(%arg0: i32) -> (i32, i32) {
    %c0_i32 = arith.constant 0 : i32
    %c0_i32_0 = arith.constant 0 : i32
    %c0_i32_1 = arith.constant 0 : i32
    return %c0_i32, %c0_i32_0 : i32, i32
  }
  func.func @transform_4(%arg0: i32) -> (i32, i32) {
    %c0_i32 = arith.constant 0 : i32
    %c0_i32_0 = arith.constant 0 : i32
    %c0_i32_1 = arith.constant 0 : i32
    return %c0_i32, %c0_i32_0 : i32, i32
  }
  func.func @transform_5(%arg0: i32) -> (i32, i32) {
    %c0_i32 = arith.constant 0 : i32
    %c0_i32_0 = arith.constant 0 : i32
    %c0_i32_1 = arith.constant 0 : i32
    return %c0_i32, %c0_i32_0 : i32, i32
  }
  func.func @transform_6(%arg0: i32) -> (i32, i32, i32) {
    %c0_i32 = arith.constant 0 : i32
    %c0_i32_0 = arith.constant 0 : i32
    %c0_i32_1 = arith.constant 0 : i32
    return %arg0, %c0_i32, %c0_i32_0 : i32, i32, i32
  }
}

</mosaic_0001>

<llo_original>
// kernel: tpu_custom_call.1
$region0: #{tpu_custom_call.1}
  #allocation0 [shape = 'u32[]', space=smem, size = 0x4, offset = 0x4, fixed_abs, tag = 'smem constant byte address 0x4 - core index']
  #allocation1 [shape = 'u32[72,128]{1,0:T(1,128)}', space=vmem, size = 0x9000, scoped, tag = 'internal scratch']
  %s0 = inlined_call_operand.hbm [shape: f32[2,4,8192], index: 0, kind: input, shape index: {}]
  %s1 = inlined_call_operand.hbm [shape: f32[2,4,8192], index: 1, kind: input, shape index: {}]
  %s2 = inlined_call_operand.vmem [shape: f32[8,8], index: 2, kind: input, shape index: {}]
  %s3 = inlined_call_operand.vmem [shape: f32[8,1], index: 3, kind: input, shape index: {}]
  %s4 = inlined_call_operand.vmem [shape: f32[4,8], index: 4, kind: input, shape index: {}]
  %s5 = inlined_call_operand.vmem [shape: f32[4,1], index: 5, kind: input, shape index: {}]
  %s6 = inlined_call_operand.hbm [shape: f32[2,4,8192], index: 6, kind: output, shape index: {}]
  %s7 = sld [smem:[#allocation0]]
  $region65: #{tpu_custom_call.1} parent=0
    _
  %s9 = ssub.s32 1, %s7
  %s10 = scalar_select 0, %s9, %s7
  $region1: #{tpu_custom_call.1} parent=0
    #allocation2 [shape = 'u8[262144]{0}', space=vmem, size = 0x40000, scoped, tag = 'input window, operand 0']
    #allocation3 [shape = 's32[2]{0}', space=sflag, size = 0x8, scoped, tag = 'scoped memory for tpu_custom_call.1']
    #allocation4 [shape = 's32[2]{0}', space=sflag, size = 0x8, scoped, tag = 'scoped memory for tpu_custom_call.1']
    #allocation5 [shape = 'u8[262144]{0}', space=vmem, size = 0x40000, scoped, tag = 'input window, operand 1']
    #allocation6 [shape = 's32[2]{0}', space=sflag, size = 0x8, scoped, tag = 'scoped memory for tpu_custom_call.1']
    #allocation7 [shape = 'u8[262144]{0}', space=vmem, size = 0x40000, scoped, tag = 'output window, operand 0']
    %11 = vsyncpa [#allocation3], 0
    %s12 = scalar_lea.sflag [#allocation3], 1
    %13 = vsyncpa %s12, 0
    %14 = vsyncpa [#allocation6], 0
    %s15 = scalar_lea.sflag [#allocation6], 1
    %16 = vsyncpa %s15, 0
    %17 = vsyncpa [#allocation4], 0
    %s18 = scalar_lea.sflag [#allocation4], 1
    %19 = vsyncpa %s18, 0
    loop: start=0, step=1, limit=4
    $region2: #{tpu_custom_call.1} parent=1 // loop_pre_header
      _
    $region3: #{tpu_custom_call.1} parent=1 // loop_header
      %s21 = sphi 0, %s25
      %p22 = scmp.ge.s32.totalorder %s21, 4
      %s31 = sphi 0, %s33
      %s34 = sphi 0, %s31
      %s35 = sphi 0, %s34
      %s51 = sphi 0, %s35
      %s57 = sphi 0, %s59
      %s60 = sphi 0, %s57
      %s61 = sphi 0, %s60
      %s77 = sphi 0, %s61
      %s81 = sphi 0, %s81
      %s83 = sphi 0, %s81
      %s84 = sphi 0, %s83
      %s98 = sphi 0, %s84
      %s102 = sphi 0, %s102
      %s104 = sphi 0, %s102
      %s105 = sphi 0, %s104
      %s119 = sphi 0, %s105
      %s123 = sphi 0, %s123
      %s125 = sphi 0, %s123
      %s126 = sphi 0, %s125
      %s140 = sphi 0, %s126
      %s144 = sphi 0, %s144
      %s146 = sphi 0, %s144
      %s147 = sphi 0, %s146
      %s161 = sphi 0, %s147
      %s167 = sphi 0, %s169
      %s170 = sphi 0, %s167
      %s171 = sphi 0, %s170
      %s187 = sphi 0, %s171
    $region4: #{tpu_custom_call.1} parent=1 // loop_header_branch
      %24 = sbr.rel (%p22) target = $region8
    $region5: #{tpu_custom_call.1} parent=1 // loop_body
      %s26 = ssub.s32 %s21, 1
      %s27 = ssub.s32 %s21, 2
      %s28 = sadd.s32 %s21, 1
      %s29 = ssub.s32 %s21, %s28
      %p30 = scmp.eq.s32.totalorder %s29, 0
      %s32 = sadd.s32 %s31, 1
      %s33 = scalar_select %p30, %s31, %s32
      %p36 = pneg %p30
      %p37 = scmp.eq.s32.totalorder %s21, 1
      %p38 = por %p36, %p37
      %p39 = scmp.ne.s32.totalorder %s31, %s34
      %p40 = scmp.eq.s32.totalorder %s21, 0
      %p41 = por %p39, %p40
      %p42 = scmp.ne.s32.totalorder %s31, %s34
      %p43 = scmp.eq.s32.totalorder %s26, 1
      %p44 = por %p42, %p43
      %p45 = scmp.ne.s32.totalorder %s34, %s35
      %p46 = scmp.eq.s32.totalorder %s26, 0
      %p47 = por %p45, %p46
      %p48 = scmp.ne.s32.totalorder %s34, %s35
      %p49 = scmp.eq.s32.totalorder %s27, 1
      %p50 = por %p48, %p49
      %p52 = scmp.ne.s32.totalorder %s35, %s51
      %p53 = scmp.eq.s32.totalorder %s27, 0
      %p54 = por %p52, %p53
      %s55 = ssub.s32 %s21, %s28
      %p56 = scmp.eq.s32.totalorder %s55, 0
      %s58 = sadd.s32 %s57, 1
      %s59 = scalar_select %p56, %s57, %s58
      %p62 = pneg %p56
      %p63 = scmp.eq.s32.totalorder %s21, 1
      %p64 = por %p62, %p63
      %p65 = scmp.ne.s32.totalorder %s57, %s60
      %p66 = scmp.eq.s32.totalorder %s21, 0
      %p67 = por %p65, %p66
      %p68 = scmp.ne.s32.totalorder %s57, %s60
      %p69 = scmp.eq.s32.totalorder %s26, 1
      %p70 = por %p68, %p69
      %p71 = scmp.ne.s32.totalorder %s60, %s61
      %p72 = scmp.eq.s32.totalorder %s26, 0
      %p73 = por %p71, %p72
      %p74 = scmp.ne.s32.totalorder %s60, %s61
      %p75 = scmp.eq.s32.totalorder %s27, 1
      %p76 = por %p74, %p75
      %p78 = scmp.ne.s32.totalorder %s61, %s77
      %p79 = scmp.eq.s32.totalorder %s27, 0
      %p80 = por %p78, %p79
      %s82 = sadd.s32 %s81, 1
      %p85 = scmp.eq.s32.totalorder %s21, 1
      %p86 = scmp.ne.s32.totalorder %s81, %s83
      %p87 = scmp.eq.s32.totalorder %s21, 0
      %p88 = por %p86, %p87
      %p89 = scmp.ne.s32.totalorder %s81, %s83
      %p90 = scmp.eq.s32.totalorder %s26, 1
      %p91 = por %p89, %p90
      %p92 = scmp.ne.s32.totalorder %s83, %s84
      %p93 = scmp.eq.s32.totalorder %s26, 0
      %p94 = por %p92, %p93
      %p95 = scmp.ne.s32.totalorder %s83, %s84
      %p96 = scmp.eq.s32.totalorder %s27, 1
      %p97 = por %p95, %p96
      %p99 = scmp.ne.s32.totalorder %s84, %s98
      %p100 = scmp.eq.s32.totalorder %s27, 0
      %p101 = por %p99, %p100
      %s103 = sadd.s32 %s102, 1
      %p106 = scmp.eq.s32.totalorder %s21, 1
      %p107 = scmp.ne.s32.totalorder %s102, %s104
      %p108 = scmp.eq.s32.totalorder %s21, 0
      %p109 = por %p107, %p108
      %p110 = scmp.ne.s32.totalorder %s102, %s104
      %p111 = scmp.eq.s32.totalorder %s26, 1
      %p112 = por %p110, %p111
      %p113 = scmp.ne.s32.totalorder %s104, %s105
      %p114 = scmp.eq.s32.totalorder %s26, 0
      %p115 = por %p113, %p114
      %p116 = scmp.ne.s32.totalorder %s104, %s105
      %p117 = scmp.eq.s32.totalorder %s27, 1
      %p118 = por %p116, %p117
      %p120 = scmp.ne.s32.totalorder %s105, %s119
      %p121 = scmp.eq.s32.totalorder %s27, 0
      %p122 = por %p120, %p121
      %s124 = sadd.s32 %s123, 1
      %p127 = scmp.eq.s32.totalorder %s21, 1
      %p128 = scmp.ne.s32.totalorder %s123, %s125
      %p129 = scmp.eq.s32.totalorder %s21, 0
      %p130 = por %p128, %p129
      %p131 = scmp.ne.s32.totalorder %s123, %s125
      %p132 = scmp.eq.s32.totalorder %s26, 1
      %p133 = por %p131, %p132
      %p134 = scmp.ne.s32.totalorder %s125, %s126
      %p135 = scmp.eq.s32.totalorder %s26, 0
      %p136 = por %p134, %p135
      %p137 = scmp.ne.s32.totalorder %s125, %s126
      %p138 = scmp.eq.s32.totalorder %s27, 1
      %p139 = por %p137, %p138
      %p141 = scmp.ne.s32.totalorder %s126, %s140
      %p142 = scmp.eq.s32.totalorder %s27, 0
      %p143 = por %p141, %p142
      %s145 = sadd.s32 %s144, 1
      %p148 = scmp.eq.s32.totalorder %s21, 1
      %p149 = scmp.ne.s32.totalorder %s144, %s146
      %p150 = scmp.eq.s32.totalorder %s21, 0
      %p151 = por %p149, %p150
      %p152 = scmp.ne.s32.totalorder %s144, %s146
      %p153 = scmp.eq.s32.totalorder %s26, 1
      %p154 = por %p152, %p153
      %p155 = scmp.ne.s32.totalorder %s146, %s147
      %p156 = scmp.eq.s32.totalorder %s26, 0
      %p157 = por %p155, %p156
      %p158 = scmp.ne.s32.totalorder %s146, %s147
      %p159 = scmp.eq.s32.totalorder %s27, 1
      %p160 = por %p158, %p159
      %p162 = scmp.ne.s32.totalorder %s147, %s161
      %p163 = scmp.eq.s32.totalorder %s27, 0
      %p164 = por %p162, %p163
      %s165 = ssub.s32 %s21, %s28
      %p166 = scmp.eq.s32.totalorder %s165, 0
      %s168 = sadd.s32 %s167, 1
      %s169 = scalar_select %p166, %s167, %s168
      %p172 = pneg %p166
      %p173 = scmp.eq.s32.totalorder %s21, 1
      %p174 = por %p172, %p173
      %p175 = scmp.ne.s32.totalorder %s167, %s170
      %p176 = scmp.eq.s32.totalorder %s21, 0
      %p177 = por %p175, %p176
      %p178 = scmp.ne.s32.totalorder %s167, %s170
      %p179 = scmp.eq.s32.totalorder %s26, 1
      %p180 = por %p178, %p179
      %p181 = scmp.ne.s32.totalorder %s170, %s171
      %p182 = scmp.eq.s32.totalorder %s26, 0
      %p183 = por %p181, %p182
      %p184 = scmp.ne.s32.totalorder %s170, %s171
      %p185 = scmp.eq.s32.totalorder %s27, 1
      %p186 = por %p184, %p185
      %p188 = scmp.ne.s32.totalorder %s171, %s187
      %p189 = scmp.eq.s32.totalorder %s27, 0
      %p190 = por %p188, %p189
      %p191 = scmp.le.s32.totalorder 1, %s21
      %p192 = scmp.lt.s32.totalorder %s21, 3
      %p193 = pnand %p191, %p192
      %p194 = pneg %p193
      // Predicated region
      $region9: #{tpu_custom_call.1} parent=5 // pred_check
        _
      $region10: #{tpu_custom_call.1} parent=5 // pred_check_branch
        %196 = sbr.rel (%p193) target = $region12
      $region11: #{tpu_custom_call.1} parent=5 // pred_region
        %s197 = ssub.s32 %s21, 1
        // Predicated region
        $region13: #{tpu_custom_call.1} parent=11 // pred_check
          %p198 = pneg %p94
        $region14: #{tpu_custom_call.1} parent=11 // pred_check_branch
          %200 = sbr.rel (%p198) target = $region16
        $region15: #{tpu_custom_call.1} parent=11 // pred_region
          _
        $region16: #{tpu_custom_call.1} parent=11 // pred_fallthru
          _
        // Predicated region
        $region17: #{tpu_custom_call.1} parent=11 // pred_check
          %p201 = pneg %p115
        $region18: #{tpu_custom_call.1} parent=11 // pred_check_branch
          %203 = sbr.rel (%p201) target = $region20
        $region19: #{tpu_custom_call.1} parent=11 // pred_region
          _
        $region20: #{tpu_custom_call.1} parent=11 // pred_fallthru
          _
        // Predicated region
        $region21: #{tpu_custom_call.1} parent=11 // pred_check
          %p204 = pneg %p136
        $region22: #{tpu_custom_call.1} parent=11 // pred_check_branch
          %206 = sbr.rel (%p204) target = $region24
        $region23: #{tpu_custom_call.1} parent=11 // pred_region
          _
        $region24: #{tpu_custom_call.1} parent=11 // pred_fallthru
          _
        // Predicated region
        $region25: #{tpu_custom_call.1} parent=11 // pred_check
          %p207 = pneg %p157
        $region26: #{tpu_custom_call.1} parent=11 // pred_check_branch
          %209 = sbr.rel (%p207) target = $region28
        $region27: #{tpu_custom_call.1} parent=11 // pred_region
          _
        $region28: #{tpu_custom_call.1} parent=11 // pred_fallthru
          _
      $region12: #{tpu_custom_call.1} parent=5 // pred_fallthru
        _
      %p210 = scmp.lt.s32.totalorder %s21, 2
      // Predicated region
      $region29: #{tpu_custom_call.1} parent=5 // pred_check
        %p211 = pneg %p210
      $region30: #{tpu_custom_call.1} parent=5 // pred_check_branch
        %213 = sbr.rel (%p211) target = $region32
      $region31: #{tpu_custom_call.1} parent=5 // pred_region
        // Predicated region
        $region33: #{tpu_custom_call.1} parent=31 // pred_check
          %p214 = pneg %p41
        $region34: #{tpu_custom_call.1} parent=31 // pred_check_branch
          %216 = sbr.rel (%p214) target = $region36
        $region35: #{tpu_custom_call.1} parent=31 // pred_region
          %s217 = sand.u32 %s31, 1
          %s218 = scalar_lea.sflag [#allocation3], %s217
          %s219 = sand.u32 %s31, 1
          %s220 = smul.addr %s219, 256
          %s221 = scalar_lea.vmem [#allocation2], %s220
          %223 = vsyncadd %s218, 0
          %s224 = smul.addr %s21, 64
          %s225 = smul.addr %s224, 4
          %s226 = scalar_lea.hbm %s0, %s225
          %s228 = sshll.u32 %s226, 4
          %s229 = int_to_ptr.hbm [resolvable:$true] %s228
          %s230 = sshll.u32 %s221, 4
          %s231 = int_to_ptr.vmem [resolvable:$true] %s230
          %233 = dma.hbm_to_vmem [thread:$0]  %s229, 4096, %s231, %s218
        $region36: #{tpu_custom_call.1} parent=31 // pred_fallthru
          _
        // Predicated region
        $region37: #{tpu_custom_call.1} parent=31 // pred_check
          %p234 = pneg %p67
        $region38: #{tpu_custom_call.1} parent=31 // pred_check_branch
          %236 = sbr.rel (%p234) target = $region40
        $region39: #{tpu_custom_call.1} parent=31 // pred_region
          %s237 = sand.u32 %s57, 1
          %s238 = scalar_lea.sflag [#allocation6], %s237
          %s239 = sand.u32 %s57, 1
          %s240 = smul.addr %s239, 256
          %s241 = scalar_lea.vmem [#allocation5], %s240
          %243 = vsyncadd %s238, 0
          %s244 = smul.addr %s21, 64
          %s245 = smul.addr %s244, 4
          %s246 = scalar_lea.hbm %s1, %s245
          %s248 = sshll.u32 %s246, 4
          %s249 = int_to_ptr.hbm [resolvable:$true] %s248
          %s250 = sshll.u32 %s241, 4
          %s251 = int_to_ptr.vmem [resolvable:$true] %s250
          %253 = dma.hbm_to_vmem [thread:$0]  %s249, 4096, %s251, %s238
        $region40: #{tpu_custom_call.1} parent=31 // pred_fallthru
          _
      $region32: #{tpu_custom_call.1} parent=5 // pred_fallthru
        _
      %p254 = scmp.le.s32.totalorder 1, %s21
      %p255 = scmp.lt.s32.totalorder %s21, 3
      %p256 = pnand %p254, %p255
      %p257 = pneg %p256
      // Predicated region
      $region41: #{tpu_custom_call.1} parent=5 // pred_check
        _
      $region42: #{tpu_custom_call.1} parent=5 // pred_check_branch
        %259 = sbr.rel (%p256) target = $region44
      $region43: #{tpu_custom_call.1} parent=5 // pred_region
        %s260 = ssub.s32 %s21, 1
        %s261 = sand.u32 %s34, 1
        %s262 = scalar_lea.sflag [#allocation3], %s261
        %s263 = sand.u32 %s34, 1
        %s264 = smul.addr %s263, 256
        %s265 = scalar_lea.vmem [#allocation2], %s264
        // Predicated region
        $region45: #{tpu_custom_call.1} parent=43 // pred_check
          %p266 = pneg %p47
        $region46: #{tpu_custom_call.1} parent=43 // pred_check_branch
          %268 = sbr.rel (%p266) target = $region48
        $region47: #{tpu_custom_call.1} parent=43 // pred_region
          %270 = dma.done %s262, 4096
        $region48: #{tpu_custom_call.1} parent=43 // pred_fallthru
          _
        %s271 = sand.u32 %s60, 1
        %s272 = scalar_lea.sflag [#allocation6], %s271
        %s273 = sand.u32 %s60, 1
        %s274 = smul.addr %s273, 256
        %s275 = scalar_lea.vmem [#allocation5], %s274
        // Predicated region
        $region49: #{tpu_custom_call.1} parent=43 // pred_check
          %p276 = pneg %p73
        $region50: #{tpu_custom_call.1} parent=43 // pred_check_branch
          %278 = sbr.rel (%p276) target = $region52
        $region51: #{tpu_custom_call.1} parent=43 // pred_region
          %280 = dma.done %s272, 4096
        $region52: #{tpu_custom_call.1} parent=43 // pred_fallthru
          _
        %s281 = sand.u32 %s34, 1
        %s282 = scalar_lea.sflag [#allocation3], %s281
        %s283 = sand.u32 %s34, 1
        %s284 = smul.addr %s283, 256
        %s285 = scalar_lea.vmem [#allocation2], %s284
        %p286 = pneg %p47
        %p287 = pneg %p44
        %s288 = sand.u32 %s60, 1
        %s289 = scalar_lea.sflag [#allocation6], %s288
        %s290 = sand.u32 %s60, 1
        %s291 = smul.addr %s290, 256
        %s292 = scalar_lea.vmem [#allocation5], %s291
        %p293 = pneg %p73
        %p294 = pneg %p70
        %p295 = pneg %p94
        %p296 = pneg %p91
        %p297 = pneg %p115
        %p298 = pneg %p112
        %p299 = pneg %p136
        %p300 = pneg %p133
        %p301 = pneg %p157
        %p302 = pneg %p154
        %p303 = pneg %p183
        %p304 = pneg %p180
        %s305 = sand.u32 %s170, 1
        %s306 = scalar_lea.sflag [#allocation4], %s305
        %s307 = sand.u32 %s170, 1
        %s308 = smul.addr %s307, 256
        %s309 = scalar_lea.vmem [#allocation7], %s308
        %v310 = vld [vmem:[%s265] sm:$0xff]
        %v311 = vld [vmem:[%s265 + $0x8] sm:$0xff]
        %v312 = vld [vmem:[%s265 + $0x10] sm:$0xff]
        %v313 = vld [vmem:[%s265 + $0x18] sm:$0xff]
        %v314 = vld [vmem:[%s265 + $0x20] sm:$0xff]
        %v315 = vld [vmem:[%s265 + $0x28] sm:$0xff]
        %v316 = vld [vmem:[%s265 + $0x30] sm:$0xff]
        %v317 = vld [vmem:[%s265 + $0x38] sm:$0xff]
        %v318 = vld [vmem:[%s265 + $0x40] sm:$0xff]
        %v319 = vld [vmem:[%s265 + $0x48] sm:$0xff]
        %v320 = vld [vmem:[%s265 + $0x50] sm:$0xff]
        %v321 = vld [vmem:[%s265 + $0x58] sm:$0xff]
        %v322 = vld [vmem:[%s265 + $0x60] sm:$0xff]
        %v323 = vld [vmem:[%s265 + $0x68] sm:$0xff]
        %v324 = vld [vmem:[%s265 + $0x70] sm:$0xff]
        %v325 = vld [vmem:[%s265 + $0x78] sm:$0xff]
        %v326 = vld [vmem:[%s265 + $0x80] sm:$0xff]
        %v327 = vld [vmem:[%s265 + $0x88] sm:$0xff]
        %v328 = vld [vmem:[%s265 + $0x90] sm:$0xff]
        %v329 = vld [vmem:[%s265 + $0x98] sm:$0xff]
        %v330 = vld [vmem:[%s265 + $0xa0] sm:$0xff]
        %v331 = vld [vmem:[%s265 + $0xa8] sm:$0xff]
        %v332 = vld [vmem:[%s265 + $0xb0] sm:$0xff]
        %v333 = vld [vmem:[%s265 + $0xb8] sm:$0xff]
        %v334 = vld [vmem:[%s265 + $0xc0] sm:$0xff]
        %v335 = vld [vmem:[%s265 + $0xc8] sm:$0xff]
        %v336 = vld [vmem:[%s265 + $0xd0] sm:$0xff]
        %v337 = vld [vmem:[%s265 + $0xd8] sm:$0xff]
        %v338 = vld [vmem:[%s265 + $0xe0] sm:$0xff]
        %v339 = vld [vmem:[%s265 + $0xe8] sm:$0xff]
        %v340 = vld [vmem:[%s265 + $0xf0] sm:$0xff]
        %v341 = vld [vmem:[%s265 + $0xf8] sm:$0xff]
        %v342 = vld [vmem:[%s275] sm:$0xff]
        %v343 = vld [vmem:[%s275 + $0x8] sm:$0xff]
        %v344 = vld [vmem:[%s275 + $0x10] sm:$0xff]
        %v345 = vld [vmem:[%s275 + $0x18] sm:$0xff]
        %v346 = vld [vmem:[%s275 + $0x20] sm:$0xff]
        %v347 = vld [vmem:[%s275 + $0x28] sm:$0xff]
        %v348 = vld [vmem:[%s275 + $0x30] sm:$0xff]
        %v349 = vld [vmem:[%s275 + $0x38] sm:$0xff]
        %v350 = vld [vmem:[%s275 + $0x40] sm:$0xff]
        %v351 = vld [vmem:[%s275 + $0x48] sm:$0xff]
        %v352 = vld [vmem:[%s275 + $0x50] sm:$0xff]
        %v353 = vld [vmem:[%s275 + $0x58] sm:$0xff]
        %v354 = vld [vmem:[%s275 + $0x60] sm:$0xff]
        %v355 = vld [vmem:[%s275 + $0x68] sm:$0xff]
        %v356 = vld [vmem:[%s275 + $0x70] sm:$0xff]
        %v357 = vld [vmem:[%s275 + $0x78] sm:$0xff]
        %v358 = vld [vmem:[%s275 + $0x80] sm:$0xff]
        %v359 = vld [vmem:[%s275 + $0x88] sm:$0xff]
        %v360 = vld [vmem:[%s275 + $0x90] sm:$0xff]
        %v361 = vld [vmem:[%s275 + $0x98] sm:$0xff]
        %v362 = vld [vmem:[%s275 + $0xa0] sm:$0xff]
        %v363 = vld [vmem:[%s275 + $0xa8] sm:$0xff]
        %v364 = vld [vmem:[%s275 + $0xb0] sm:$0xff]
        %v365 = vld [vmem:[%s275 + $0xb8] sm:$0xff]
        %v366 = vld [vmem:[%s275 + $0xc0] sm:$0xff]
        %v367 = vld [vmem:[%s275 + $0xc8] sm:$0xff]
        %v368 = vld [vmem:[%s275 + $0xd0] sm:$0xff]
        %v369 = vld [vmem:[%s275 + $0xd8] sm:$0xff]
        %v370 = vld [vmem:[%s275 + $0xe0] sm:$0xff]
        %v371 = vld [vmem:[%s275 + $0xe8] sm:$0xff]
        %v372 = vld [vmem:[%s275 + $0xf0] sm:$0xff]
        %v373 = vld [vmem:[%s275 + $0xf8] sm:$0xff]
        %406 = vst [vmem:[#allocation1] ss:$2 sm:$0xff] %v310
        %s407 = scalar_lea.vmem [#allocation1], 16
        %408 = vst [vmem:[%s407] ss:$2 sm:$0xff] %v311
        %s409 = scalar_lea.vmem [#allocation1], 32
        %410 = vst [vmem:[%s409] ss:$2 sm:$0xff] %v312
        %s411 = scalar_lea.vmem [#allocation1], 48
        %412 = vst [vmem:[%s411] ss:$2 sm:$0xff] %v313
        %v413 = vld.sshfl [vmem:[#allocation1] sm:$0xff pattern:$0x75316420]
        %v414 = vld.sshfl [vmem:[#allocation1 + $0x8] sm:$0xff pattern:$0x75316420]
        %v415 = vld.sshfl [vmem:[#allocation1 + $0x10] sm:$0xff pattern:$0x75316420]
        %v416 = vld.sshfl [vmem:[#allocation1 + $0x18] sm:$0xff pattern:$0x75316420]
        %v417 = vld.sshfl [vmem:[#allocation1 + $0x20] sm:$0xff pattern:$0x75316420]
        %v418 = vld.sshfl [vmem:[#allocation1 + $0x28] sm:$0xff pattern:$0x75316420]
        %v419 = vld.sshfl [vmem:[#allocation1 + $0x30] sm:$0xff pattern:$0x75316420]
        %v420 = vld.sshfl [vmem:[#allocation1 + $0x38] sm:$0xff pattern:$0x75316420]
        %421 = vst [vmem:[#allocation1] ss:$2 sm:$0xff] %v314
        %422 = vst [vmem:[%s407] ss:$2 sm:$0xff] %v315
        %423 = vst [vmem:[%s409] ss:$2 sm:$0xff] %v316
        %424 = vst [vmem:[%s411] ss:$2 sm:$0xff] %v317
        %v425 = vld.sshfl [vmem:[#allocation1] sm:$0xff pattern:$0x75316420]
        %v426 = vld.sshfl [vmem:[#allocation1 + $0x8] sm:$0xff pattern:$0x75316420]
        %v427 = vld.sshfl [vmem:[#allocation1 + $0x10] sm:$0xff pattern:$0x75316420]
        %v428 = vld.sshfl [vmem:[#allocation1 + $0x18] sm:$0xff pattern:$0x75316420]
        %v429 = vld.sshfl [vmem:[#allocation1 + $0x20] sm:$0xff pattern:$0x75316420]
        %v430 = vld.sshfl [vmem:[#allocation1 + $0x28] sm:$0xff pattern:$0x75316420]
        %v431 = vld.sshfl [vmem:[#allocation1 + $0x30] sm:$0xff pattern:$0x75316420]
        %v432 = vld.sshfl [vmem:[#allocation1 + $0x38] sm:$0xff pattern:$0x75316420]
        %433 = vst [vmem:[#allocation1] ss:$2 sm:$0xff] %v318
        %434 = vst [vmem:[%s407] ss:$2 sm:$0xff] %v319
        %435 = vst [vmem:[%s409] ss:$2 sm:$0xff] %v320
        %436 = vst [vmem:[%s411] ss:$2 sm:$0xff] %v321
        %v437 = vld.sshfl [vmem:[#allocation1] sm:$0xff pattern:$0x75316420]
        %v438 = vld.sshfl [vmem:[#allocation1 + $0x8] sm:$0xff pattern:$0x75316420]
        %v439 = vld.sshfl [vmem:[#allocation1 + $0x10] sm:$0xff pattern:$0x75316420]
        %v440 = vld.sshfl [vmem:[#allocation1 + $0x18] sm:$0xff pattern:$0x75316420]
        %v441 = vld.sshfl [vmem:[#allocation1 + $0x20] sm:$0xff pattern:$0x75316420]
        %v442 = vld.sshfl [vmem:[#allocation1 + $0x28] sm:$0xff pattern:$0x75316420]
        %v443 = vld.sshfl [vmem:[#allocation1 + $0x30] sm:$0xff pattern:$0x75316420]
        %v444 = vld.sshfl [vmem:[#allocation1 + $0x38] sm:$0xff pattern:$0x75316420]
        %445 = vst [vmem:[#allocation1] ss:$2 sm:$0xff] %v322
        %446 = vst [vmem:[%s407] ss:$2 sm:$0xff] %v323
        %447 = vst [vmem:[%s409] ss:$2 sm:$0xff] %v324
        %448 = vst [vmem:[%s411] ss:$2 sm:$0xff] %v325
        %v449 = vld.sshfl [vmem:[#allocation1] sm:$0xff pattern:$0x75316420]
        %v450 = vld.sshfl [vmem:[#allocation1 + $0x8] sm:$0xff pattern:$0x75316420]
        %v451 = vld.sshfl [vmem:[#allocation1 + $0x10] sm:$0xff pattern:$0x75316420]
        %v452 = vld.sshfl [vmem:[#allocation1 + $0x18] sm:$0xff pattern:$0x75316420]
        %v453 = vld.sshfl [vmem:[#allocation1 + $0x20] sm:$0xff pattern:$0x75316420]
        %v454 = vld.sshfl [vmem:[#allocation1 + $0x28] sm:$0xff pattern:$0x75316420]
        %v455 = vld.sshfl [vmem:[#allocation1 + $0x30] sm:$0xff pattern:$0x75316420]
        %v456 = vld.sshfl [vmem:[#allocation1 + $0x38] sm:$0xff pattern:$0x75316420]
        %457 = vst [vmem:[#allocation1] ss:$2 sm:$0xff] %v326
        %458 = vst [vmem:[%s407] ss:$2 sm:$0xff] %v327
        %459 = vst [vmem:[%s409] ss:$2 sm:$0xff] %v328
        %460 = vst [vmem:[%s411] ss:$2 sm:$0xff] %v329
        %v461 = vld.sshfl [vmem:[#allocation1] sm:$0xff pattern:$0x75316420]
        %v462 = vld.sshfl [vmem:[#allocation1 + $0x8] sm:$0xff pattern:$0x75316420]
        %v463 = vld.sshfl [vmem:[#allocation1 + $0x10] sm:$0xff pattern:$0x75316420]
        %v464 = vld.sshfl [vmem:[#allocation1 + $0x18] sm:$0xff pattern:$0x75316420]
        %v465 = vld.sshfl [vmem:[#allocation1 + $0x20] sm:$0xff pattern:$0x75316420]
        %v466 = vld.sshfl [vmem:[#allocation1 + $0x28] sm:$0xff pattern:$0x75316420]
        %v467 = vld.sshfl [vmem:[#allocation1 + $0x30] sm:$0xff pattern:$0x75316420]
        %v468 = vld.sshfl [vmem:[#allocation1 + $0x38] sm:$0xff pattern:$0x75316420]
        %469 = vst [vmem:[#allocation1] ss:$2 sm:$0xff] %v330
        %470 = vst [vmem:[%s407] ss:$2 sm:$0xff] %v331
        %471 = vst [vmem:[%s409] ss:$2 sm:$0xff] %v332
        %472 = vst [vmem:[%s411] ss:$2 sm:$0xff] %v333
        %v473 = vld.sshfl [vmem:[#allocation1] sm:$0xff pattern:$0x75316420]
        %v474 = vld.sshfl [vmem:[#allocation1 + $0x8] sm:$0xff pattern:$0x75316420]
        %v475 = vld.sshfl [vmem:[#allocation1 + $0x10] sm:$0xff pattern:$0x75316420]
        %v476 = vld.sshfl [vmem:[#allocation1 + $0x18] sm:$0xff pattern:$0x75316420]
        %v477 = vld.sshfl [vmem:[#allocation1 + $0x20] sm:$0xff pattern:$0x75316420]
        %v478 = vld.sshfl [vmem:[#allocation1 + $0x28] sm:$0xff pattern:$0x75316420]
        %v479 = vld.sshfl [vmem:[#allocation1 + $0x30] sm:$0xff pattern:$0x75316420]
        %v480 = vld.sshfl [vmem:[#allocation1 + $0x38] sm:$0xff pattern:$0x75316420]
        %481 = vst [vmem:[#allocation1] ss:$2 sm:$0xff] %v334
        %482 = vst [vmem:[%s407] ss:$2 sm:$0xff] %v335
        %483 = vst [vmem:[%s409] ss:$2 sm:$0xff] %v336
        %484 = vst [vmem:[%s411] ss:$2 sm:$0xff] %v337
        %v485 = vld.sshfl [vmem:[#allocation1] sm:$0xff pattern:$0x75316420]
        %v486 = vld.sshfl [vmem:[#allocation1 + $0x8] sm:$0xff pattern:$0x75316420]
        %v487 = vld.sshfl [vmem:[#allocation1 + $0x10] sm:$0xff pattern:$0x75316420]
        %v488 = vld.sshfl [vmem:[#allocation1 + $0x18] sm:$0xff pattern:$0x75316420]
        %v489 = vld.sshfl [vmem:[#allocation1 + $0x20] sm:$0xff pattern:$0x75316420]
        %v490 = vld.sshfl [vmem:[#allocation1 + $0x28] sm:$0xff pattern:$0x75316420]
        %v491 = vld.sshfl [vmem:[#allocation1 + $0x30] sm:$0xff pattern:$0x75316420]
        %v492 = vld.sshfl [vmem:[#allocation1 + $0x38] sm:$0xff pattern:$0x75316420]
        %493 = vst [vmem:[#allocation1] ss:$2 sm:$0xff] %v338
        %494 = vst [vmem:[%s407] ss:$2 sm:$0xff] %v339
        %495 = vst [vmem:[%s409] ss:$2 sm:$0xff] %v340
        %496 = vst [vmem:[%s411] ss:$2 sm:$0xff] %v341
        %v497 = vld.sshfl [vmem:[#allocation1] sm:$0xff pattern:$0x75316420]
        %v498 = vld.sshfl [vmem:[#allocation1 + $0x8] sm:$0xff pattern:$0x75316420]
        %v499 = vld.sshfl [vmem:[#allocation1 + $0x10] sm:$0xff pattern:$0x75316420]
        %v500 = vld.sshfl [vmem:[#allocation1 + $0x18] sm:$0xff pattern:$0x75316420]
        %v501 = vld.sshfl [vmem:[#allocation1 + $0x20] sm:$0xff pattern:$0x75316420]
        %v502 = vld.sshfl [vmem:[#allocation1 + $0x28] sm:$0xff pattern:$0x75316420]
        %v503 = vld.sshfl [vmem:[#allocation1 + $0x30] sm:$0xff pattern:$0x75316420]
        %v504 = vld.sshfl [vmem:[#allocation1 + $0x38] sm:$0xff pattern:$0x75316420]
        %vm569 = vcmask 1043456
        %v570 = vsel %vm569, %v413, 0.0
        %v571 = vsel %vm569, %v414, 0.0
        %v572 = vadd.f32 %v570, %v571
        %v573 = vsel %vm569, %v415, 0.0
        %v574 = vadd.f32 %v572, %v573
        %v575 = vsel %vm569, %v416, 0.0
        %v576 = vadd.f32 %v574, %v575
        %v577 = vsel %vm569, %v417, 0.0
        %v578 = vadd.f32 %v576, %v577
        %v579 = vsel %vm569, %v418, 0.0
        %v580 = vadd.f32 %v578, %v579
        %v581 = vsel %vm569, %v419, 0.0
        %v582 = vadd.f32 %v580, %v581
        %v583 = vsel %vm569, %v420, 0.0
        %v584 = vadd.f32 %v582, %v583
        %v585 = vsel %vm569, %v425, 0.0
        %v586 = vadd.f32 %v584, %v585
        %v587 = vsel %vm569, %v426, 0.0
        %v588 = vadd.f32 %v586, %v587
        %v589 = vsel %vm569, %v427, 0.0
        %v590 = vadd.f32 %v588, %v589
        %v591 = vsel %vm569, %v428, 0.0
        %v592 = vadd.f32 %v590, %v591
        %v593 = vsel %vm569, %v429, 0.0
        %v594 = vadd.f32 %v592, %v593
        %v595 = vsel %vm569, %v430, 0.0
        %v596 = vadd.f32 %v594, %v595
        %v597 = vsel %vm569, %v431, 0.0
        %v598 = vadd.f32 %v596, %v597
        %v599 = vsel %vm569, %v432, 0.0
        %v600 = vadd.f32 %v598, %v599
        %v601 = vsel %vm569, %v437, 0.0
        %v602 = vadd.f32 %v600, %v601
        %v603 = vsel %vm569, %v438, 0.0
        %v604 = vadd.f32 %v602, %v603
        %v605 = vsel %vm569, %v439, 0.0
        %v606 = vadd.f32 %v604, %v605
        %v607 = vsel %vm569, %v440, 0.0
        %v608 = vadd.f32 %v606, %v607
        %v609 = vsel %vm569, %v441, 0.0
        %v610 = vadd.f32 %v608, %v609
        %v611 = vsel %vm569, %v442, 0.0
        %v612 = vadd.f32 %v610, %v611
        %v613 = vsel %vm569, %v443, 0.0
        %v614 = vadd.f32 %v612, %v613
        %v615 = vsel %vm569, %v444, 0.0
        %v616 = vadd.f32 %v614, %v615
        %v617 = vsel %vm569, %v449, 0.0
        %v618 = vadd.f32 %v616, %v617
        %v619 = vsel %vm569, %v450, 0.0
        %v620 = vadd.f32 %v618, %v619
        %v621 = vsel %vm569, %v451, 0.0
        %v622 = vadd.f32 %v620, %v621
        %v623 = vsel %vm569, %v452, 0.0
        %v624 = vadd.f32 %v622, %v623
        %v625 = vsel %vm569, %v453, 0.0
        %v626 = vadd.f32 %v624, %v625
        %v627 = vsel %vm569, %v454, 0.0
        %v628 = vadd.f32 %v626, %v627
        %v629 = vsel %vm569, %v455, 0.0
        %v630 = vadd.f32 %v628, %v629
        %v631 = vsel %vm569, %v456, 0.0
        %v632 = vadd.f32 %v630, %v631
        %v633 = vsel %vm569, %v461, 0.0
        %v634 = vadd.f32 %v632, %v633
        %v635 = vsel %vm569, %v462, 0.0
        %v636 = vadd.f32 %v634, %v635
        %v637 = vsel %vm569, %v463, 0.0
        %v638 = vadd.f32 %v636, %v637
        %v639 = vsel %vm569, %v464, 0.0
        %v640 = vadd.f32 %v638, %v639
        %v641 = vsel %vm569, %v465, 0.0
        %v642 = vadd.f32 %v640, %v641
        %v643 = vsel %vm569, %v466, 0.0
        %v644 = vadd.f32 %v642, %v643
        %v645 = vsel %vm569, %v467, 0.0
        %v646 = vadd.f32 %v644, %v645
        %v647 = vsel %vm569, %v468, 0.0
        %v648 = vadd.f32 %v646, %v647
        %v649 = vsel %vm569, %v473, 0.0
        %v650 = vadd.f32 %v648, %v649
        %v651 = vsel %vm569, %v474, 0.0
        %v652 = vadd.f32 %v650, %v651
        %v653 = vsel %vm569, %v475, 0.0
        %v654 = vadd.f32 %v652, %v653
        %v655 = vsel %vm569, %v476, 0.0
        %v656 = vadd.f32 %v654, %v655
        %v657 = vsel %vm569, %v477, 0.0
        %v658 = vadd.f32 %v656, %v657
        %v659 = vsel %vm569, %v478, 0.0
        %v660 = vadd.f32 %v658, %v659
        %v661 = vsel %vm569, %v479, 0.0
        %v662 = vadd.f32 %v660, %v661
        %v663 = vsel %vm569, %v480, 0.0
        %v664 = vadd.f32 %v662, %v663
        %v665 = vsel %vm569, %v485, 0.0
        %v666 = vadd.f32 %v664, %v665
        %v667 = vsel %vm569, %v486, 0.0
        %v668 = vadd.f32 %v666, %v667
        %v669 = vsel %vm569, %v487, 0.0
        %v670 = vadd.f32 %v668, %v669
        %v671 = vsel %vm569, %v488, 0.0
        %v672 = vadd.f32 %v670, %v671
        %v673 = vsel %vm569, %v489, 0.0
        %v674 = vadd.f32 %v672, %v673
        %v675 = vsel %vm569, %v490, 0.0
        %v676 = vadd.f32 %v674, %v675
        %v677 = vsel %vm569, %v491, 0.0
        %v678 = vadd.f32 %v676, %v677
        %v679 = vsel %vm569, %v492, 0.0
        %v680 = vadd.f32 %v678, %v679
        %v681 = vsel %vm569, %v497, 0.0
        %v682 = vadd.f32 %v680, %v681
        %v683 = vsel %vm569, %v498, 0.0
        %v684 = vadd.f32 %v682, %v683
        %v685 = vsel %vm569, %v499, 0.0
        %v686 = vadd.f32 %v684, %v685
        %v687 = vsel %vm569, %v500, 0.0
        %v688 = vadd.f32 %v686, %v687
        %v689 = vsel %vm569, %v501, 0.0
        %v690 = vadd.f32 %v688, %v689
        %v691 = vsel %vm569, %v502, 0.0
        %v692 = vadd.f32 %v690, %v691
        %v693 = vsel %vm569, %v503, 0.0
        %v694 = vadd.f32 %v692, %v693
        %v695 = vsel %vm569, %v504, 0.0
        %v696 = vadd.f32 %v694, %v695
        %697 = vadd.xlane.f32.xlu0 %v696
        %v698 = vpop.xlane.xlu0 %697
        %v699 = vmul.f32 %v698, 0.00012207031
        %732 = vst [vmem:[#allocation1] ss:$2 sm:$0xff] %v342
        %s733 = scalar_lea.vmem [#allocation1], 16
        %734 = vst [vmem:[%s733] ss:$2 sm:$0xff] %v343
        %s735 = scalar_lea.vmem [#allocation1], 32
        %736 = vst [vmem:[%s735] ss:$2 sm:$0xff] %v344
        %s737 = scalar_lea.vmem [#allocation1], 48
        %738 = vst [vmem:[%s737] ss:$2 sm:$0xff] %v345
        %v739 = vld.sshfl [vmem:[#allocation1] sm:$0xff pattern:$0x75316420]
        %v740 = vld.sshfl [vmem:[#allocation1 + $0x8] sm:$0xff pattern:$0x75316420]
        %v741 = vld.sshfl [vmem:[#allocation1 + $0x10] sm:$0xff pattern:$0x75316420]
        %v742 = vld.sshfl [vmem:[#allocation1 + $0x18] sm:$0xff pattern:$0x75316420]
        %v743 = vld.sshfl [vmem:[#allocation1 + $0x20] sm:$0xff pattern:$0x75316420]
        %v744 = vld.sshfl [vmem:[#allocation1 + $0x28] sm:$0xff pattern:$0x75316420]
        %v745 = vld.sshfl [vmem:[#allocation1 + $0x30] sm:$0xff pattern:$0x75316420]
        %v746 = vld.sshfl [vmem:[#allocation1 + $0x38] sm:$0xff pattern:$0x75316420]
        %747 = vst [vmem:[#allocation1] ss:$2 sm:$0xff] %v346
        %748 = vst [vmem:[%s733] ss:$2 sm:$0xff] %v347
        %749 = vst [vmem:[%s735] ss:$2 sm:$0xff] %v348
        %750 = vst [vmem:[%s737] ss:$2 sm:$0xff] %v349
        %v751 = vld.sshfl [vmem:[#allocation1] sm:$0xff pattern:$0x75316420]
        %v752 = vld.sshfl [vmem:[#allocation1 + $0x8] sm:$0xff pattern:$0x75316420]
        %v753 = vld.sshfl [vmem:[#allocation1 + $0x10] sm:$0xff pattern:$0x75316420]
        %v754 = vld.sshfl [vmem:[#allocation1 + $0x18] sm:$0xff pattern:$0x75316420]
        %v755 = vld.sshfl [vmem:[#allocation1 + $0x20] sm:$0xff pattern:$0x75316420]
        %v756 = vld.sshfl [vmem:[#allocation1 + $0x28] sm:$0xff pattern:$0x75316420]
        %v757 = vld.sshfl [vmem:[#allocation1 + $0x30] sm:$0xff pattern:$0x75316420]
        %v758 = vld.sshfl [vmem:[#allocation1 + $0x38] sm:$0xff pattern:$0x75316420]
        %759 = vst [vmem:[#allocation1] ss:$2 sm:$0xff] %v350
        %760 = vst [vmem:[%s733] ss:$2 sm:$0xff] %v351
        %761 = vst [vmem:[%s735] ss:$2 sm:$0xff] %v352
        %762 = vst [vmem:[%s737] ss:$2 sm:$0xff] %v353
        %v763 = vld.sshfl [vmem:[#allocation1] sm:$0xff pattern:$0x75316420]
        %v764 = vld.sshfl [vmem:[#allocation1 + $0x8] sm:$0xff pattern:$0x75316420]
        %v765 = vld.sshfl [vmem:[#allocation1 + $0x10] sm:$0xff pattern:$0x75316420]
        %v766 = vld.sshfl [vmem:[#allocation1 + $0x18] sm:$0xff pattern:$0x75316420]
        %v767 = vld.sshfl [vmem:[#allocation1 + $0x20] sm:$0xff pattern:$0x75316420]
        %v768 = vld.sshfl [vmem:[#allocation1 + $0x28] sm:$0xff pattern:$0x75316420]
        %v769 = vld.sshfl [vmem:[#allocation1 + $0x30] sm:$0xff pattern:$0x75316420]
        %v770 = vld.sshfl [vmem:[#allocation1 + $0x38] sm:$0xff pattern:$0x75316420]
        %771 = vst [vmem:[#allocation1] ss:$2 sm:$0xff] %v354
        %772 = vst [vmem:[%s733] ss:$2 sm:$0xff] %v355
        %773 = vst [vmem:[%s735] ss:$2 sm:$0xff] %v356
        %774 = vst [vmem:[%s737] ss:$2 sm:$0xff] %v357
        %v775 = vld.sshfl [vmem:[#allocation1] sm:$0xff pattern:$0x75316420]
        %v776 = vld.sshfl [vmem:[#allocation1 + $0x8] sm:$0xff pattern:$0x75316420]
        %v777 = vld.sshfl [vmem:[#allocation1 + $0x10] sm:$0xff pattern:$0x75316420]
        %v778 = vld.sshfl [vmem:[#allocation1 + $0x18] sm:$0xff pattern:$0x75316420]
        %v779 = vld.sshfl [vmem:[#allocation1 + $0x20] sm:$0xff pattern:$0x75316420]
        %v780 = vld.sshfl [vmem:[#allocation1 + $0x28] sm:$0xff pattern:$0x75316420]
        %v781 = vld.sshfl [vmem:[#allocation1 + $0x30] sm:$0xff pattern:$0x75316420]
        %v782 = vld.sshfl [vmem:[#allocation1 + $0x38] sm:$0xff pattern:$0x75316420]
        %783 = vst [vmem:[#allocation1] ss:$2 sm:$0xff] %v358
        %784 = vst [vmem:[%s733] ss:$2 sm:$0xff] %v359
        %785 = vst [vmem:[%s735] ss:$2 sm:$0xff] %v360
        %786 = vst [vmem:[%s737] ss:$2 sm:$0xff] %v361
        %v787 = vld.sshfl [vmem:[#allocation1] sm:$0xff pattern:$0x75316420]
        %v788 = vld.sshfl [vmem:[#allocation1 + $0x8] sm:$0xff pattern:$0x75316420]
        %v789 = vld.sshfl [vmem:[#allocation1 + $0x10] sm:$0xff pattern:$0x75316420]
        %v790 = vld.sshfl [vmem:[#allocation1 + $0x18] sm:$0xff pattern:$0x75316420]
        %v791 = vld.sshfl [vmem:[#allocation1 + $0x20] sm:$0xff pattern:$0x75316420]
        %v792 = vld.sshfl [vmem:[#allocation1 + $0x28] sm:$0xff pattern:$0x75316420]
        %v793 = vld.sshfl [vmem:[#allocation1 + $0x30] sm:$0xff pattern:$0x75316420]
        %v794 = vld.sshfl [vmem:[#allocation1 + $0x38] sm:$0xff pattern:$0x75316420]
        %795 = vst [vmem:[#allocation1] ss:$2 sm:$0xff] %v362
        %796 = vst [vmem:[%s733] ss:$2 sm:$0xff] %v363
        %797 = vst [vmem:[%s735] ss:$2 sm:$0xff] %v364
        %798 = vst [vmem:[%s737] ss:$2 sm:$0xff] %v365
        %v799 = vld.sshfl [vmem:[#allocation1] sm:$0xff pattern:$0x75316420]
        %v800 = vld.sshfl [vmem:[#allocation1 + $0x8] sm:$0xff pattern:$0x75316420]
        %v801 = vld.sshfl [vmem:[#allocation1 + $0x10] sm:$0xff pattern:$0x75316420]
        %v802 = vld.sshfl [vmem:[#allocation1 + $0x18] sm:$0xff pattern:$0x75316420]
        %v803 = vld.sshfl [vmem:[#allocation1 + $0x20] sm:$0xff pattern:$0x75316420]
        %v804 = vld.sshfl [vmem:[#allocation1 + $0x28] sm:$0xff pattern:$0x75316420]
        %v805 = vld.sshfl [vmem:[#allocation1 + $0x30] sm:$0xff pattern:$0x75316420]
        %v806 = vld.sshfl [vmem:[#allocation1 + $0x38] sm:$0xff pattern:$0x75316420]
        %807 = vst [vmem:[#allocation1] ss:$2 sm:$0xff] %v366
        %808 = vst [vmem:[%s733] ss:$2 sm:$0xff] %v367
        %809 = vst [vmem:[%s735] ss:$2 sm:$0xff] %v368
        %810 = vst [vmem:[%s737] ss:$2 sm:$0xff] %v369
        %v811 = vld.sshfl [vmem:[#allocation1] sm:$0xff pattern:$0x75316420]
        %v812 = vld.sshfl [vmem:[#allocation1 + $0x8] sm:$0xff pattern:$0x75316420]
        %v813 = vld.sshfl [vmem:[#allocation1 + $0x10] sm:$0xff pattern:$0x75316420]
        %v814 = vld.sshfl [vmem:[#allocation1 + $0x18] sm:$0xff pattern:$0x75316420]
        %v815 = vld.sshfl [vmem:[#allocation1 + $0x20] sm:$0xff pattern:$0x75316420]
        %v816 = vld.sshfl [vmem:[#allocation1 + $0x28] sm:$0xff pattern:$0x75316420]
        %v817 = vld.sshfl [vmem:[#allocation1 + $0x30] sm:$0xff pattern:$0x75316420]
        %v818 = vld.sshfl [vmem:[#allocation1 + $0x38] sm:$0xff pattern:$0x75316420]
        %819 = vst [vmem:[#allocation1] ss:$2 sm:$0xff] %v370
        %820 = vst [vmem:[%s733] ss:$2 sm:$0xff] %v371
        %821 = vst [vmem:[%s735] ss:$2 sm:$0xff] %v372
        %822 = vst [vmem:[%s737] ss:$2 sm:$0xff] %v373
        %v823 = vld.sshfl [vmem:[#allocation1] sm:$0xff pattern:$0x75316420]
        %v824 = vld.sshfl [vmem:[#allocation1 + $0x8] sm:$0xff pattern:$0x75316420]
        %v825 = vld.sshfl [vmem:[#allocation1 + $0x10] sm:$0xff pattern:$0x75316420]
        %v826 = vld.sshfl [vmem:[#allocation1 + $0x18] sm:$0xff pattern:$0x75316420]
        %v827 = vld.sshfl [vmem:[#allocation1 + $0x20] sm:$0xff pattern:$0x75316420]
        %v828 = vld.sshfl [vmem:[#allocation1 + $0x28] sm:$0xff pattern:$0x75316420]
        %v829 = vld.sshfl [vmem:[#allocation1 + $0x30] sm:$0xff pattern:$0x75316420]
        %v830 = vld.sshfl [vmem:[#allocation1 + $0x38] sm:$0xff pattern:$0x75316420]
        %v895 = vsel %vm569, %v739, 0.0
        %v896 = vsel %vm569, %v740, 0.0
        %v897 = vadd.f32 %v895, %v896
        %v898 = vsel %vm569, %v741, 0.0
        %v899 = vadd.f32 %v897, %v898
        %v900 = vsel %vm569, %v742, 0.0
        %v901 = vadd.f32 %v899, %v900
        %v902 = vsel %vm569, %v743, 0.0
        %v903 = vadd.f32 %v901, %v902
        %v904 = vsel %vm569, %v744, 0.0
        %v905 = vadd.f32 %v903, %v904
        %v906 = vsel %vm569, %v745, 0.0
        %v907 = vadd.f32 %v905, %v906
        %v908 = vsel %vm569, %v746, 0.0
        %v909 = vadd.f32 %v907, %v908
        %v910 = vsel %vm569, %v751, 0.0
        %v911 = vadd.f32 %v909, %v910
        %v912 = vsel %vm569, %v752, 0.0
        %v913 = vadd.f32 %v911, %v912
        %v914 = vsel %vm569, %v753, 0.0
        %v915 = vadd.f32 %v913, %v914
        %v916 = vsel %vm569, %v754, 0.0
        %v917 = vadd.f32 %v915, %v916
        %v918 = vsel %vm569, %v755, 0.0
        %v919 = vadd.f32 %v917, %v918
        %v920 = vsel %vm569, %v756, 0.0
        %v921 = vadd.f32 %v919, %v920
        %v922 = vsel %vm569, %v757, 0.0
        %v923 = vadd.f32 %v921, %v922
        %v924 = vsel %vm569, %v758, 0.0
        %v925 = vadd.f32 %v923, %v924
        %v926 = vsel %vm569, %v763, 0.0
        %v927 = vadd.f32 %v925, %v926
        %v928 = vsel %vm569, %v764, 0.0
        %v929 = vadd.f32 %v927, %v928
        %v930 = vsel %vm569, %v765, 0.0
        %v931 = vadd.f32 %v929, %v930
        %v932 = vsel %vm569, %v766, 0.0
        %v933 = vadd.f32 %v931, %v932
        %v934 = vsel %vm569, %v767, 0.0
        %v935 = vadd.f32 %v933, %v934
        %v936 = vsel %vm569, %v768, 0.0
        %v937 = vadd.f32 %v935, %v936
        %v938 = vsel %vm569, %v769, 0.0
        %v939 = vadd.f32 %v937, %v938
        %v940 = vsel %vm569, %v770, 0.0
        %v941 = vadd.f32 %v939, %v940
        %v942 = vsel %vm569, %v775, 0.0
        %v943 = vadd.f32 %v941, %v942
        %v944 = vsel %vm569, %v776, 0.0
        %v945 = vadd.f32 %v943, %v944
        %v946 = vsel %vm569, %v777, 0.0
        %v947 = vadd.f32 %v945, %v946
        %v948 = vsel %vm569, %v778, 0.0
        %v949 = vadd.f32 %v947, %v948
        %v950 = vsel %vm569, %v779, 0.0
        %v951 = vadd.f32 %v949, %v950
        %v952 = vsel %vm569, %v780, 0.0
        %v953 = vadd.f32 %v951, %v952
        %v954 = vsel %vm569, %v781, 0.0
        %v955 = vadd.f32 %v953, %v954
        %v956 = vsel %vm569, %v782, 0.0
        %v957 = vadd.f32 %v955, %v956
        %v958 = vsel %vm569, %v787, 0.0
        %v959 = vadd.f32 %v957, %v958
        %v960 = vsel %vm569, %v788, 0.0
        %v961 = vadd.f32 %v959, %v960
        %v962 = vsel %vm569, %v789, 0.0
        %v963 = vadd.f32 %v961, %v962
        %v964 = vsel %vm569, %v790, 0.0
        %v965 = vadd.f32 %v963, %v964
        %v966 = vsel %vm569, %v791, 0.0
        %v967 = vadd.f32 %v965, %v966
        %v968 = vsel %vm569, %v792, 0.0
        %v969 = vadd.f32 %v967, %v968
        %v970 = vsel %vm569, %v793, 0.0
        %v971 = vadd.f32 %v969, %v970
        %v972 = vsel %vm569, %v794, 0.0
        %v973 = vadd.f32 %v971, %v972
        %v974 = vsel %vm569, %v799, 0.0
        %v975 = vadd.f32 %v973, %v974
        %v976 = vsel %vm569, %v800, 0.0
        %v977 = vadd.f32 %v975, %v976
        %v978 = vsel %vm569, %v801, 0.0
        %v979 = vadd.f32 %v977, %v978
        %v980 = vsel %vm569, %v802, 0.0
        %v981 = vadd.f32 %v979, %v980
        %v982 = vsel %vm569, %v803, 0.0
        %v983 = vadd.f32 %v981, %v982
        %v984 = vsel %vm569, %v804, 0.0
        %v985 = vadd.f32 %v983, %v984
        %v986 = vsel %vm569, %v805, 0.0
        %v987 = vadd.f32 %v985, %v986
        %v988 = vsel %vm569, %v806, 0.0
        %v989 = vadd.f32 %v987, %v988
        %v990 = vsel %vm569, %v811, 0.0
        %v991 = vadd.f32 %v989, %v990
        %v992 = vsel %vm569, %v812, 0.0
        %v993 = vadd.f32 %v991, %v992
        %v994 = vsel %vm569, %v813, 0.0
        %v995 = vadd.f32 %v993, %v994
        %v996 = vsel %vm569, %v814, 0.0
        %v997 = vadd.f32 %v995, %v996
        %v998 = vsel %vm569, %v815, 0.0
        %v999 = vadd.f32 %v997, %v998
        %v1000 = vsel %vm569, %v816, 0.0
        %v1001 = vadd.f32 %v999, %v1000
        %v1002 = vsel %vm569, %v817, 0.0
        %v1003 = vadd.f32 %v1001, %v1002
        %v1004 = vsel %vm569, %v818, 0.0
        %v1005 = vadd.f32 %v1003, %v1004
        %v1006 = vsel %vm569, %v823, 0.0
        %v1007 = vadd.f32 %v1005, %v1006
        %v1008 = vsel %vm569, %v824, 0.0
        %v1009 = vadd.f32 %v1007, %v1008
        %v1010 = vsel %vm569, %v825, 0.0
        %v1011 = vadd.f32 %v1009, %v1010
        %v1012 = vsel %vm569, %v826, 0.0
        %v1013 = vadd.f32 %v1011, %v1012
        %v1014 = vsel %vm569, %v827, 0.0
        %v1015 = vadd.f32 %v1013, %v1014
        %v1016 = vsel %vm569, %v828, 0.0
        %v1017 = vadd.f32 %v1015, %v1016
        %v1018 = vsel %vm569, %v829, 0.0
        %v1019 = vadd.f32 %v1017, %v1018
        %v1020 = vsel %vm569, %v830, 0.0
        %v1021 = vadd.f32 %v1019, %v1020
        %1022 = vadd.xlane.f32.xlu0 %v1021
        %v1023 = vpop.xlane.xlu0 %1022
        %v1024 = vmul.f32 %v1023, 0.00012207031
        %v1025 = vld [vmem:[%s2] sm:$0xff]
        %1027 = vrot.lane.b32.xlu0 %v1025, 124
        %v1028 = vpop.permute.xlu0 %1027
        %vm1029 = vcmask 31744
        %v1030 = vsel %vm1029, %v1028, 0
        %v1033 = vsel %vm569, %v1024, 0
        %1035 = vmatpush.msra.mxu0 0.0
        %1036 = vmatpush.msra.mxu0 0.0
        %1037 = vmatpush.msra.mxu0 0.0
        %1038 = vmatpush.msra.mxu0 0.0
        %1039 = vmatpush.msra.mxu0 0.0
        %1040 = vmatpush.msra.mxu0 0.0
        %1041 = vmatpush.msra.mxu0 0.0
        %1042 = vmatpush.msra.mxu0 0.0
        %1043 = vmatpush.msra.mxu0 0.0
        %1044 = vmatpush.msra.mxu0 0.0
        %1045 = vmatpush.msra.mxu0 0.0
        %1046 = vmatpush.msra.mxu0 0.0
        %1047 = vmatpush.msra.mxu0 0.0
        %1048 = vmatpush.msra.mxu0 0.0
        %1049 = vmatpush.msra.mxu0 0.0
        %1050 = vmatpush.msra.mxu0 %v1033
        %1051 = vmatmul.f32.gmra.mxu0 %v1030
        %v1052 = vpop.f32.mrf.mxu0
        %v1053 = vadd.f32 0.0, %v1052
        %1054 = vdwg.mxu0
        %v1055 = vsel %vm1029, %v1025, 0
        %v1058 = vsel %vm569, %v699, 0
        %1060 = vmatpush.msra.mxu0 0.0
        %1061 = vmatpush.msra.mxu0 0.0
        %1062 = vmatpush.msra.mxu0 0.0
        %1063 = vmatpush.msra.mxu0 0.0
        %1064 = vmatpush.msra.mxu0 0.0
        %1065 = vmatpush.msra.mxu0 0.0
        %1066 = vmatpush.msra.mxu0 0.0
        %1067 = vmatpush.msra.mxu0 0.0
        %1068 = vmatpush.msra.mxu0 0.0
        %1069 = vmatpush.msra.mxu0 0.0
        %1070 = vmatpush.msra.mxu0 0.0
        %1071 = vmatpush.msra.mxu0 0.0
        %1072 = vmatpush.msra.mxu0 0.0
        %1073 = vmatpush.msra.mxu0 0.0
        %1074 = vmatpush.msra.mxu0 0.0
        %1075 = vmatpush.msra.mxu0 %v1058
        %1076 = vmatmul.f32.gmra.mxu0 %v1055
        %v1077 = vpop.f32.mrf.mxu0
        %v1078 = vadd.f32 %v1053, %v1077
        %1079 = vdwg.mxu0
        %v1080 = vld [vmem:[%s3] sm:$0xff]
        %v1081 = vadd.f32 %v1078, %v1080
        %vm1082 = vcmp.ge.f32.partialorder %v1081, 0.0
        %v1083 = vmul.f32 %v1081, 1e-05
        %v1084 = vsel %vm1082, %v1081, %v1083
        %v1085 = vld [vmem:[%s4] sm:$0xf]
        %v1086 = vld [vmem:[%s5] sm:$0xf]
        %vm1087 = vcmask 64512
        %v1089 = vsel %vm1087, %v1085, 0
        %1091 = vmatpush.msra.mxu0 0.0
        %1092 = vmatpush.msra.mxu0 0.0
        %1093 = vmatpush.msra.mxu0 0.0
        %1094 = vmatpush.msra.mxu0 0.0
        %1095 = vmatpush.msra.mxu0 0.0
        %1096 = vmatpush.msra.mxu0 0.0
        %1097 = vmatpush.msra.mxu0 0.0
        %1098 = vmatpush.msra.mxu0 0.0
        %1099 = vmatpush.msra.mxu0 0.0
        %1100 = vmatpush.msra.mxu0 0.0
        %1101 = vmatpush.msra.mxu0 0.0
        %1102 = vmatpush.msra.mxu0 0.0
        %1103 = vmatpush.msra.mxu0 0.0
        %1104 = vmatpush.msra.mxu0 0.0
        %1105 = vmatpush.msra.mxu0 0.0
        %1106 = vmatpush.msra.mxu0 %v1084
        %1107 = vmatmul.f32.gmra.mxu0 %v1089
        %v1108 = vpop.f32.mrf.mxu0
        %v1109 = vadd.f32 %v1086, %v1108
        %1110 = vdwg.mxu0
        %v1111 = vxor.u32 %v1109, 2147483648
        %v1112 = vmul.f32 %v1111, 1.442695
        %v1113 = vpow.pop %v1112
        %v1114 = vadd.f32 %v1113, 1.0
        %v1115 = vrcp.pop %v1114
        %v1116 = vmul.f32 %v1114, %v1115
        %v1117 = vsub.f32 1.0, %v1116
        %v1118 = vmul.f32 %v1115, %v1117
        %v1119 = vadd.f32 %v1115, %v1118
        %vm1120 = vweird.f32 %v1114
        %vm1121 = vweird.f32 %v1115
        %vm1122 = vmor %vm1120, %vm1121
        %v1123 = vsel %vm1122, %v1115, %v1119
        %v1124 = vand.u32 2147483647, %v1114
        %vm1125 = vcmp.eq.f32.partialorder %v1124, 8.507059e+37
        %v1126 = vand.u32 %v1114, 2147483648
        %v1127 = vor.u32 1.1754944e-38, %v1126
        %v1128 = vsel %vm1125, %v1127, %v1123
        %v1129 = vmul.f32 1.0, %v1128
        %1131 = vset.pattern.permute.xlu0 0
        %1132 = vperm.xlu0 %1131, %v1129
        %v1133 = vpop.permute.xlu0 %1132
        %v1135 = vunpack.c.l.s4 839922192
        %v1136 = vunpack.c.0.s8 %v1135
        %v1137 = vperm.slane %v1133, %v1136
        %v1139 = vmul.f32 %v310, %v1137
        %v1140 = vmul.f32 %v311, %v1137
        %v1141 = vmul.f32 %v312, %v1137
        %v1142 = vmul.f32 %v313, %v1137
        %v1143 = vmul.f32 %v314, %v1137
        %v1144 = vmul.f32 %v315, %v1137
        %v1145 = vmul.f32 %v316, %v1137
        %v1146 = vmul.f32 %v317, %v1137
        %v1147 = vmul.f32 %v318, %v1137
        %v1148 = vmul.f32 %v319, %v1137
        %v1149 = vmul.f32 %v320, %v1137
        %v1150 = vmul.f32 %v321, %v1137
        %v1151 = vmul.f32 %v322, %v1137
        %v1152 = vmul.f32 %v323, %v1137
        %v1153 = vmul.f32 %v324, %v1137
        %v1154 = vmul.f32 %v325, %v1137
        %v1155 = vmul.f32 %v326, %v1137
        %v1156 = vmul.f32 %v327, %v1137
        %v1157 = vmul.f32 %v328, %v1137
        %v1158 = vmul.f32 %v329, %v1137
        %v1159 = vmul.f32 %v330, %v1137
        %v1160 = vmul.f32 %v331, %v1137
        %v1161 = vmul.f32 %v332, %v1137
        %v1162 = vmul.f32 %v333, %v1137
        %v1163 = vmul.f32 %v334, %v1137
        %v1164 = vmul.f32 %v335, %v1137
        %v1165 = vmul.f32 %v336, %v1137
        %v1166 = vmul.f32 %v337, %v1137
        %v1167 = vmul.f32 %v338, %v1137
        %v1168 = vmul.f32 %v339, %v1137
        %v1169 = vmul.f32 %v340, %v1137
        %v1170 = vmul.f32 %v341, %v1137
        %v1171 = vadd.f32 %v1139, %v342
        %v1172 = vadd.f32 %v1140, %v343
        %v1173 = vadd.f32 %v1141, %v344
        %v1174 = vadd.f32 %v1142, %v345
        %v1175 = vadd.f32 %v1143, %v346
        %v1176 = vadd.f32 %v1144, %v347
        %v1177 = vadd.f32 %v1145, %v348
        %v1178 = vadd.f32 %v1146, %v349
        %v1179 = vadd.f32 %v1147, %v350
        %v1180 = vadd.f32 %v1148, %v351
        %v1181 = vadd.f32 %v1149, %v352
        %v1182 = vadd.f32 %v1150, %v353
        %v1183 = vadd.f32 %v1151, %v354
        %v1184 = vadd.f32 %v1152, %v355
        %v1185 = vadd.f32 %v1153, %v356
        %v1186 = vadd.f32 %v1154, %v357
        %v1187 = vadd.f32 %v1155, %v358
        %v1188 = vadd.f32 %v1156, %v359
        %v1189 = vadd.f32 %v1157, %v360
        %v1190 = vadd.f32 %v1158, %v361
        %v1191 = vadd.f32 %v1159, %v362
        %v1192 = vadd.f32 %v1160, %v363
        %v1193 = vadd.f32 %v1161, %v364
        %v1194 = vadd.f32 %v1162, %v365
        %v1195 = vadd.f32 %v1163, %v366
        %v1196 = vadd.f32 %v1164, %v367
        %v1197 = vadd.f32 %v1165, %v368
        %v1198 = vadd.f32 %v1166, %v369
        %v1199 = vadd.f32 %v1167, %v370
        %v1200 = vadd.f32 %v1168, %v371
        %v1201 = vadd.f32 %v1169, %v372
        %v1202 = vadd.f32 %v1170, %v373
        %1203 = vst [vmem:[%s309] sm:$0xff] %v1171
        %1204 = vst [vmem:[%s309 + $0x8] sm:$0xff] %v1172
        %1205 = vst [vmem:[%s309 + $0x10] sm:$0xff] %v1173
        %1206 = vst [vmem:[%s309 + $0x18] sm:$0xff] %v1174
        %1207 = vst [vmem:[%s309 + $0x20] sm:$0xff] %v1175
        %1208 = vst [vmem:[%s309 + $0x28] sm:$0xff] %v1176
        %1209 = vst [vmem:[%s309 + $0x30] sm:$0xff] %v1177
        %1210 = vst [vmem:[%s309 + $0x38] sm:$0xff] %v1178
        %1211 = vst [vmem:[%s309 + $0x40] sm:$0xff] %v1179
        %1212 = vst [vmem:[%s309 + $0x48] sm:$0xff] %v1180
        %1213 = vst [vmem:[%s309 + $0x50] sm:$0xff] %v1181
        %1214 = vst [vmem:[%s309 + $0x58] sm:$0xff] %v1182
        %1215 = vst [vmem:[%s309 + $0x60] sm:$0xff] %v1183
        %1216 = vst [vmem:[%s309 + $0x68] sm:$0xff] %v1184
        %1217 = vst [vmem:[%s309 + $0x70] sm:$0xff] %v1185
        %1218 = vst [vmem:[%s309 + $0x78] sm:$0xff] %v1186
        %1219 = vst [vmem:[%s309 + $0x80] sm:$0xff] %v1187
        %1220 = vst [vmem:[%s309 + $0x88] sm:$0xff] %v1188
        %1221 = vst [vmem:[%s309 + $0x90] sm:$0xff] %v1189
        %1222 = vst [vmem:[%s309 + $0x98] sm:$0xff] %v1190
        %1223 = vst [vmem:[%s309 + $0xa0] sm:$0xff] %v1191
        %1224 = vst [vmem:[%s309 + $0xa8] sm:$0xff] %v1192
        %1225 = vst [vmem:[%s309 + $0xb0] sm:$0xff] %v1193
        %1226 = vst [vmem:[%s309 + $0xb8] sm:$0xff] %v1194
        %1227 = vst [vmem:[%s309 + $0xc0] sm:$0xff] %v1195
        %1228 = vst [vmem:[%s309 + $0xc8] sm:$0xff] %v1196
        %1229 = vst [vmem:[%s309 + $0xd0] sm:$0xff] %v1197
        %1230 = vst [vmem:[%s309 + $0xd8] sm:$0xff] %v1198
        %1231 = vst [vmem:[%s309 + $0xe0] sm:$0xff] %v1199
        %1232 = vst [vmem:[%s309 + $0xe8] sm:$0xff] %v1200
        %1233 = vst [vmem:[%s309 + $0xf0] sm:$0xff] %v1201
        %1234 = vst [vmem:[%s309 + $0xf8] sm:$0xff] %v1202
        %s1235 = sand.u32 %s170, 1
        %s1236 = scalar_lea.sflag [#allocation4], %s1235
        %s1237 = sand.u32 %s170, 1
        %s1238 = smul.addr %s1237, 256
        %s1239 = scalar_lea.vmem [#allocation7], %s1238
        // Predicated region
        $region53: #{tpu_custom_call.1} parent=43 // pred_check
          %p1240 = pneg %p180
        $region54: #{tpu_custom_call.1} parent=43 // pred_check_branch
          %1242 = sbr.rel (%p1240) target = $region56
        $region55: #{tpu_custom_call.1} parent=43 // pred_region
          %1244 = vsyncadd %s1236, 0
          %s1245 = smul.addr %s26, 64
          %s1246 = smul.addr %s1245, 4
          %s1247 = scalar_lea.hbm %s6, %s1246
          %s1249 = sshll.u32 %s1239, 4
          %s1250 = int_to_ptr.vmem [resolvable:$true] %s1249
          %s1251 = sshll.u32 %s1247, 4
          %s1252 = int_to_ptr.hbm [resolvable:$true] %s1251
          %1254 = dma.vmem_to_hbm [thread:$0]  %s1250, 4096, %s1252, %s1236
        $region56: #{tpu_custom_call.1} parent=43 // pred_fallthru
          _
      $region44: #{tpu_custom_call.1} parent=5 // pred_fallthru
        _
      %p1255 = scmp.le.s32.totalorder 2, %s21
      // Predicated region
      $region57: #{tpu_custom_call.1} parent=5 // pred_check
        %p1256 = pneg %p1255
      $region58: #{tpu_custom_call.1} parent=5 // pred_check_branch
        %1258 = sbr.rel (%p1256) target = $region60
      $region59: #{tpu_custom_call.1} parent=5 // pred_region
        %s1259 = ssub.s32 %s21, 2
        // Predicated region
        $region61: #{tpu_custom_call.1} parent=59 // pred_check
          %p1260 = pneg %p186
        $region62: #{tpu_custom_call.1} parent=59 // pred_check_branch
          %1262 = sbr.rel (%p1260) target = $region64
        $region63: #{tpu_custom_call.1} parent=59 // pred_region
          %s1263 = sand.u32 %s171, 1
          %s1264 = scalar_lea.sflag [#allocation4], %s1263
          %s1265 = sand.u32 %s171, 1
          %s1266 = smul.addr %s1265, 256
          %s1267 = scalar_lea.vmem [#allocation7], %s1266
          %1269 = dma.done %s1264, 4096
        $region64: #{tpu_custom_call.1} parent=59 // pred_fallthru
          _
      $region60: #{tpu_custom_call.1} parent=5 // pred_fallthru
        _
    $region6: #{tpu_custom_call.1} parent=1 // loop_footer
      %s25 = sadd.s32 1, %s21
    $region7: #{tpu_custom_call.1} parent=1 // loop_footer_branch
      %20 = sbr.rel target = $region3
    $region8: #{tpu_custom_call.1} parent=1 // loop_exit
      _
    %1270 = vsyncpa [#allocation3], 1
    %s1271 = scalar_lea.sflag [#allocation3], 1
    %1272 = vsyncpa %s1271, 1
    %1273 = vsyncpa [#allocation6], 1
    %s1274 = scalar_lea.sflag [#allocation6], 1
    %1275 = vsyncpa %s1274, 1
    %1276 = vsyncpa [#allocation4], 1
    %s1277 = scalar_lea.sflag [#allocation4], 1
    %1278 = vsyncpa %s1277, 1

</llo_original>
